<compile_context>
chip_gen: v6e
topology: v6e:2x2x1
jax: 0.10.0
libtpu: 0.0.40
codegen_flags: <defaults>
</compile_context>

<pallas_src>
import jax
import jax.numpy as jnp
from jax.experimental import pallas as pl
from jax.experimental.pallas import tpu as pltpu


_BLOCK_BUDGET_BYTES = 4 * 1024 * 1024   # target per-block size (in+out, double-buffered
                                        # => ~16 MiB VMEM, fits every generation)


def _copy_kernel(x_ref, o_ref):
    # Pure copy: the channel permutation is done entirely by the BlockSpec
    # index maps, so in/out tiles have identical shapes.
    o_ref[...] = x_ref[...]


def _choose_tiling(b, big, hw, itemsize):
    """Returns (batch_block, rows, lanes, row_tile) for the 5-D view.

    rows * lanes == hw; the block covers (batch_block, big, row_tile, lanes).
    Last-two block dims always satisfy the (8,128) rule: row_tile is a multiple
    of 8 or equals rows, lanes is a multiple of 128 or equals hw.
    """
    if b * big * hw * itemsize <= _BLOCK_BUDGET_BYTES:
        return b, 1, hw, 1                      # whole batch + whole spatial per step
    if big * hw * itemsize <= _BLOCK_BUDGET_BYTES:
        return 1, 1, hw, 1                      # one batch element per step
    if hw % 128 == 0:
        lanes = 128
        rows = hw // 128
        cands = [d for d in range(1, rows + 1)
                 if rows % d == 0 and (d % 8 == 0 or d == rows)]
        fitting = [d for d in cands
                   if big * d * lanes * itemsize <= _BLOCK_BUDGET_BYTES]
        row_tile = max(fitting) if fitting else min(cands)
        return 1, rows, lanes, row_tile
    # Spatial extent not 128-divisible: keep it whole (lane dim == full array dim).
    return 1, 1, hw, 1


def channel_shuffle(x: jax.Array, groups: int) -> jax.Array:
    """Pallas channel shuffle. x: (B, C, H, W), NCHW (same semantics as PyTorch)."""
    b, c, h, w = x.shape
    assert c % groups == 0, "channels must be divisible by groups"
    g = groups
    cpg = c // g
    hw = h * w
    itemsize = jnp.dtype(x.dtype).itemsize

    big = max(g, cpg)
    bb, rows, lanes, row_tile = _choose_tiling(b, big, hw, itemsize)

    # 5-D views (free reshapes of contiguous NCHW data).
    x5 = x.reshape(b, g, cpg, rows, lanes)
    out5_shape = (b, cpg, g, rows, lanes)

    n_b = b // bb
    n_s = rows // row_tile

    if g <= cpg:
        # Grid over the G factor; each block covers all Cpg channels of one group.
        grid = (n_b, g, n_s)
        in_spec = pl.BlockSpec(
            (bb, pl.Squeezed(), cpg, row_tile, lanes),
            lambda bi, j, s: (bi, j, 0, s, 0))
        out_spec = pl.BlockSpec(
            (bb, cpg, pl.Squeezed(), row_tile, lanes),
            lambda bi, j, s: (bi, 0, j, s, 0))
    else:
        # Grid over the Cpg factor; each block covers all G groups of one channel slot.
        grid = (n_b, cpg, n_s)
        in_spec = pl.BlockSpec(
            (bb, g, pl.Squeezed(), row_tile, lanes),
            lambda bi, i, s: (bi, 0, i, s, 0))
        out_spec = pl.BlockSpec(
            (bb, pl.Squeezed(), g, row_tile, lanes),
            lambda bi, i, s: (bi, i, 0, s, 0))

    block_bytes = bb * big * row_tile * lanes * itemsize
    vmem_limit = min(64 * 1024 * 1024, max(32 * 1024 * 1024, 5 * block_bytes))

    out5 = pl.pallas_call(
        _copy_kernel,
        out_shape=jax.ShapeDtypeStruct(out5_shape, x.dtype),
        grid=grid,
        in_specs=[in_spec],
        out_specs=out_spec,
        compiler_params=pltpu.CompilerParams(
            dimension_semantics=("parallel", "parallel", "parallel"),
            vmem_limit_bytes=vmem_limit,
        ),
    )(x5)

    return out5.reshape(b, c, h, w)


def channel_shuffle_ref(x: jax.Array, groups: int) -> jax.Array:
    """Pure-JAX reference (mirrors the PyTorch view/transpose/view)."""
    b, c, h, w = x.shape
    cpg = c // groups
    y = x.reshape(b, groups, cpg, h, w)
    y = jnp.transpose(y, (0, 2, 1, 3, 4))
    return y.reshape(b, c, h, w)


if __name__ == "__main__":
    key = jax.random.PRNGKey(0)
    B, C, H, W = 2, 4, 16, 16
    groups = 2

    x = jax.random.normal(key, (B, C, H, W), dtype=jnp.float32)

    out = channel_shuffle(x, groups)
    out = jax.block_until_ready(out)

    ref = channel_shuffle_ref(x, groups)
    assert out.shape == ref.shape and out.dtype == ref.dtype
    assert bool(jnp.all(out == ref))

    print("KERNEL_OK")
</pallas_src>

<mosaic_0001>
module attributes {stable_mosaic.version = 11 : i64} {
  func.func @_copy_kernel(%arg0: i32, %arg1: i32, %arg2: i32, %arg3: memref<2x1x2x1x256xf32, #tpu.memory_space<vmem>>, %arg4: memref<2x2x1x1x256xf32, #tpu.memory_space<vmem>>) attributes {dimension_semantics = [#tpu.dimension_semantics<parallel>, #tpu.dimension_semantics<parallel>, #tpu.dimension_semantics<parallel>], iteration_bounds = array<i64: 1, 2, 1>, scalar_prefetch = 0 : i64, scratch_operands = 0 : i64, tpu.core_type = #tpu.core_type<tc>, window_params = [{transform_indices = @transform_0, window_bounds = array<i64: 2, 1, 2, 1, 256>}, {transform_indices = @transform_1, window_bounds = array<i64: 2, 2, 1, 1, 256>}]} {
    %c0 = arith.constant 0 : index
    %c0_0 = arith.constant 0 : index
    %c0_1 = arith.constant 0 : index
    %c0_2 = arith.constant 0 : index
    %c0_3 = arith.constant 0 : index
    %0 = vector.load %arg3[%c0, %c0_0, %c0_1, %c0_2, %c0_3] : memref<2x1x2x1x256xf32, #tpu.memory_space<vmem>>, vector<2x1x2x1x256xf32>
    %1 = vector.shape_cast %0 : vector<2x1x2x1x256xf32> to vector<2x2x1x256xf32>
    %c0_4 = arith.constant 0 : index
    %c0_5 = arith.constant 0 : index
    %c0_6 = arith.constant 0 : index
    %c0_7 = arith.constant 0 : index
    %c0_8 = arith.constant 0 : index
    %2 = vector.load %arg4[%c0_4, %c0_5, %c0_6, %c0_7, %c0_8] : memref<2x2x1x1x256xf32, #tpu.memory_space<vmem>>, vector<2x2x1x1x256xf32>
    %3 = vector.shape_cast %2 : vector<2x2x1x1x256xf32> to vector<2x2x1x256xf32>
    %4 = vector.shape_cast %1 : vector<2x2x1x256xf32> to vector<2x2x1x1x256xf32>
    tpu.vector_store %arg4[%c0_4, %c0_5, %c0_6, %c0_7, %c0_8], %4 {strides = array<i32>} : memref<2x2x1x1x256xf32, #tpu.memory_space<vmem>>, vector<2x2x1x1x256xf32>,
    return
  }
  func.func @transform_0(%arg0: i32, %arg1: i32, %arg2: i32) -> (i32, i32, i32, i32, i32) {
    %c0_i32 = arith.constant 0 : i32
    %c0_i32_0 = arith.constant 0 : i32
    %c0_i32_1 = arith.constant 0 : i32
    return %arg0, %arg1, %c0_i32, %arg2, %c0_i32_0 : i32, i32, i32, i32, i32
  }
  func.func @transform_1(%arg0: i32, %arg1: i32, %arg2: i32) -> (i32, i32, i32, i32, i32) {
    %c0_i32 = arith.constant 0 : i32
    %c0_i32_0 = arith.constant 0 : i32
    %c0_i32_1 = arith.constant 0 : i32
    return %arg0, %c0_i32, %arg1, %arg2, %c0_i32_0 : i32, i32, i32, i32, i32
  }
}

</mosaic_0001>

<llo_original>
// kernel: tpu_custom_call.1
$region0: #{tpu_custom_call.1}
  #allocation0 [shape = 'u32[]', space=smem, size = 0x4, offset = 0x4, fixed_abs, tag = 'smem constant byte address 0x4 - core index']
  #allocation1 [shape = 'u32[144,128]{1,0:T(1,128)}', space=vmem, size = 0x12000, scoped, tag = 'internal scratch']
  #allocation6 [shape = 's32[]', space=sflag, size = 0x4, offset = 0, fixed_abs, tag = 'sflag constant byte address 0x0 - dummy sync flag']
  %s0 = inlined_call_operand.hbm [shape: f32[2,2,2,1,256], index: 0, kind: input, shape index: {}]
  %s1 = inlined_call_operand.hbm [shape: f32[2,2,2,1,256], index: 1, kind: output, shape index: {}]
  %s2 = sld [smem:[#allocation0]]
  $region41: #{tpu_custom_call.1} parent=0
    _
  %s4 = ssub.s32 1, %s2
  %s5 = scalar_select 0, %s4, %s2
  $region1: #{tpu_custom_call.1} parent=0
    #allocation2 [shape = 'u8[8192]{0}', space=vmem, size = 0x2000, scoped, tag = 'input window, operand 0']
    #allocation3 [shape = 's32[2]{0}', space=sflag, size = 0x8, scoped, tag = 'scoped memory for tpu_custom_call.1']
    #allocation4 [shape = 's32[2]{0}', space=sflag, size = 0x8, scoped, tag = 'scoped memory for tpu_custom_call.1']
    #allocation5 [shape = 'u8[8192]{0}', space=vmem, size = 0x2000, scoped, tag = 'output window, operand 0']
    %6 = vsyncpa [#allocation3], 0
    %s7 = scalar_lea.sflag [#allocation3], 1
    %8 = vsyncpa %s7, 0
    %9 = vsyncpa [#allocation4], 0
    %s10 = scalar_lea.sflag [#allocation4], 1
    %11 = vsyncpa %s10, 0
    loop: start=0, step=1, limit=4
    $region2: #{tpu_custom_call.1} parent=1 // loop_pre_header
      _
    $region3: #{tpu_custom_call.1} parent=1 // loop_header
      %s13 = sphi 0, %s17
      %p14 = scmp.ge.s32.totalorder %s13, 4
      %s20 = sphi 0, %s39
      %s21 = sphi 0, %s35
      %s22 = sphi 0, %s31
      %s23 = sphi 0, %s20
      %s24 = sphi 0, %s21
      %s25 = sphi 0, %s22
      %s26 = sphi 0, %s23
      %s27 = sphi 0, %s24
      %s28 = sphi 0, %s25
      %s46 = sphi 0, %s48
      %s49 = sphi 0, %s46
      %s50 = sphi 0, %s49
      %s66 = sphi 0, %s50
      %s76 = sphi 0, %s78
      %s79 = sphi 0, %s76
      %s80 = sphi 0, %s79
      %s96 = sphi 0, %s80
    $region4: #{tpu_custom_call.1} parent=1 // loop_header_branch
      %16 = sbr.rel (%p14) target = $region8
    $region5: #{tpu_custom_call.1} parent=1 // loop_body
      %s18 = ssub.s32 %s13, 1
      %s19 = ssub.s32 %s13, 2
      %s29 = sadd.s32 1, %s22
      %p30 = scmp.ge.s32.totalorder %s29, 1
      %s31 = scalar_select %p30, 0, %s29
      %s32 = sadd.s32 1, %s21
      %s33 = scalar_select %p30, %s32, %s21
      %p34 = scmp.ge.s32.totalorder %s33, 2
      %s35 = scalar_select %p34, 0, %s33
      %s36 = sadd.s32 1, %s20
      %s37 = scalar_select %p34, %s36, %s20
      %p38 = scmp.ge.s32.totalorder %s37, 1
      %s39 = scalar_select %p38, 0, %s37
      %s40 = ssub.s32 %s20, %s39
      %s41 = ssub.s32 %s21, %s35
      %s42 = sor.u32 %s40, %s41
      %s43 = ssub.s32 %s22, %s31
      %s44 = sor.u32 %s42, %s43
      %p45 = scmp.eq.s32.totalorder %s44, 0
      %s47 = sadd.s32 %s46, 1
      %s48 = scalar_select %p45, %s46, %s47
      %p51 = pneg %p45
      %p52 = scmp.eq.s32.totalorder %s13, 1
      %p53 = por %p51, %p52
      %p54 = scmp.ne.s32.totalorder %s46, %s49
      %p55 = scmp.eq.s32.totalorder %s13, 0
      %p56 = por %p54, %p55
      %p57 = scmp.ne.s32.totalorder %s46, %s49
      %p58 = scmp.eq.s32.totalorder %s18, 1
      %p59 = por %p57, %p58
      %p60 = scmp.ne.s32.totalorder %s49, %s50
      %p61 = scmp.eq.s32.totalorder %s18, 0
      %p62 = por %p60, %p61
      %p63 = scmp.ne.s32.totalorder %s49, %s50
      %p64 = scmp.eq.s32.totalorder %s19, 1
      %p65 = por %p63, %p64
      %p67 = scmp.ne.s32.totalorder %s50, %s66
      %p68 = scmp.eq.s32.totalorder %s19, 0
      %p69 = por %p67, %p68
      %s70 = ssub.s32 %s20, %s39
      %s71 = ssub.s32 %s21, %s35
      %s72 = sor.u32 %s70, %s71
      %s73 = ssub.s32 %s22, %s31
      %s74 = sor.u32 %s72, %s73
      %p75 = scmp.eq.s32.totalorder %s74, 0
      %s77 = sadd.s32 %s76, 1
      %s78 = scalar_select %p75, %s76, %s77
      %p81 = pneg %p75
      %p82 = scmp.eq.s32.totalorder %s13, 1
      %p83 = por %p81, %p82
      %p84 = scmp.ne.s32.totalorder %s76, %s79
      %p85 = scmp.eq.s32.totalorder %s13, 0
      %p86 = por %p84, %p85
      %p87 = scmp.ne.s32.totalorder %s76, %s79
      %p88 = scmp.eq.s32.totalorder %s18, 1
      %p89 = por %p87, %p88
      %p90 = scmp.ne.s32.totalorder %s79, %s80
      %p91 = scmp.eq.s32.totalorder %s18, 0
      %p92 = por %p90, %p91
      %p93 = scmp.ne.s32.totalorder %s79, %s80
      %p94 = scmp.eq.s32.totalorder %s19, 1
      %p95 = por %p93, %p94
      %p97 = scmp.ne.s32.totalorder %s80, %s96
      %p98 = scmp.eq.s32.totalorder %s19, 0
      %p99 = por %p97, %p98
      %p100 = scmp.le.s32.totalorder 1, %s13
      %p101 = scmp.lt.s32.totalorder %s13, 3
      %p102 = pnand %p100, %p101
      %p103 = pneg %p102
      // Predicated region
      $region9: #{tpu_custom_call.1} parent=5 // pred_check
        _
      $region10: #{tpu_custom_call.1} parent=5 // pred_check_branch
        %105 = sbr.rel (%p102) target = $region12
      $region11: #{tpu_custom_call.1} parent=5 // pred_region
        %s106 = ssub.s32 %s13, 1
      $region12: #{tpu_custom_call.1} parent=5 // pred_fallthru
        _
      %p107 = scmp.lt.s32.totalorder %s13, 2
      // Predicated region
      $region13: #{tpu_custom_call.1} parent=5 // pred_check
        %p108 = pneg %p107
      $region14: #{tpu_custom_call.1} parent=5 // pred_check_branch
        %110 = sbr.rel (%p108) target = $region16
      $region15: #{tpu_custom_call.1} parent=5 // pred_region
        // Predicated region
        $region17: #{tpu_custom_call.1} parent=15 // pred_check
          %p111 = pneg %p56
        $region18: #{tpu_custom_call.1} parent=15 // pred_check_branch
          %113 = sbr.rel (%p111) target = $region20
        $region19: #{tpu_custom_call.1} parent=15 // pred_region
          #allocation7 [shape = 'u32[6]{0}', space=smem, size = 0x18, scoped, tag = 'DMA stride descriptor']
          %s114 = sand.u32 %s46, 1
          %s115 = scalar_lea.sflag [#allocation3], %s114
          %s116 = sand.u32 %s46, 1
          %s117 = smul.addr %s116, 8
          %s118 = scalar_lea.vmem [#allocation2], %s117
          %s119 = smul.u32 2, %s20
          %s121 = ssub.s32 128, 128
          %122 = vsyncadd %s115, %s121
          %s123 = smul.addr %s22, 2
          %s124 = smul.addr %s21, 4
          %s125 = sadd.s32 %s123, %s124
          %s126 = smul.addr %s119, 8
          %s127 = sadd.s32 %s125, %s126
          %s128 = smul.addr %s127, 16
          %s129 = scalar_lea.hbm %s0, %s128
          %s131 = sshll.u32 1, 14
          %s132 = sxor.u32 4294967295, %s131
          %s134 = sld [smem:[#allocation0]]
          %s135 = sadd.s32 2, %s134
          %s137 = sshll.u32 7, 26
          %s138 = sxor.u32 4294967295, %s137
          %s139 = sand.u32 0, %s138
          %s140 = sshll.u32 %s135, 26
          %s141 = sor.u32 %s139, %s140
          %s142 = sshll.u32 %s118, 4
          %s143 = int_to_ptr.vmem [resolvable:$true] %s142
          %149 = sst [smem:[#allocation7]] 128
          %s150 = scalar_lea.smem [#allocation7], 1
          %151 = sst [smem:[%s150]] 64
          %s152 = scalar_lea.smem [#allocation7], 2
          %153 = sst [smem:[%s152]] 2
          %s154 = scalar_lea.smem [#allocation7], 3
          %155 = sst [smem:[%s154]] 32
          %s156 = scalar_lea.smem [#allocation7], 4
          %157 = sst [smem:[%s156]] 32
          %s158 = scalar_lea.smem [#allocation7], 5
          %159 = sst [smem:[%s158]] 2
          %161 = dma.general %s129, 128, %s143, %s115, 131072, [#allocation7], %s141, 0
        $region20: #{tpu_custom_call.1} parent=15 // pred_fallthru
          _
      $region16: #{tpu_custom_call.1} parent=5 // pred_fallthru
        _
      %p162 = scmp.le.s32.totalorder 1, %s13
      %p163 = scmp.lt.s32.totalorder %s13, 3
      %p164 = pnand %p162, %p163
      %p165 = pneg %p164
      // Predicated region
      $region21: #{tpu_custom_call.1} parent=5 // pred_check
        _
      $region22: #{tpu_custom_call.1} parent=5 // pred_check_branch
        %167 = sbr.rel (%p164) target = $region24
      $region23: #{tpu_custom_call.1} parent=5 // pred_region
        %s168 = ssub.s32 %s13, 1
        %s169 = sand.u32 %s49, 1
        %s170 = scalar_lea.sflag [#allocation3], %s169
        %s171 = sand.u32 %s49, 1
        %s172 = smul.addr %s171, 8
        %s173 = scalar_lea.vmem [#allocation2], %s172
        // Predicated region
        $region25: #{tpu_custom_call.1} parent=23 // pred_check
          %p174 = pneg %p62
        $region26: #{tpu_custom_call.1} parent=23 // pred_check_branch
          %176 = sbr.rel (%p174) target = $region28
        $region27: #{tpu_custom_call.1} parent=23 // pred_region
          %177 = dma.done %s170, 128
        $region28: #{tpu_custom_call.1} parent=23 // pred_fallthru
          _
        %s178 = sand.u32 %s49, 1
        %s179 = scalar_lea.sflag [#allocation3], %s178
        %s180 = sand.u32 %s49, 1
        %s181 = smul.addr %s180, 8
        %s182 = scalar_lea.vmem [#allocation2], %s181
        %p183 = pneg %p62
        %p184 = pneg %p59
        %p185 = pneg %p92
        %p186 = pneg %p89
        %s187 = sand.u32 %s79, 1
        %s188 = scalar_lea.sflag [#allocation4], %s187
        %s189 = sand.u32 %s79, 1
        %s190 = smul.addr %s189, 8
        %s191 = scalar_lea.vmem [#allocation5], %s190
        %s192 = smul.u32 2, %s23
        %s193 = smul.u32 2, %s23
        %v194 = vld [vmem:[%s173] sm:$0x3]
        %v195 = vld [vmem:[%s173 + $0x2] sm:$0x3]
        %v196 = vld [vmem:[%s173 + $0x4] sm:$0x3]
        %v197 = vld [vmem:[%s173 + $0x6] sm:$0x3]
        %v198 = vlaneseq
        %vm199 = vcmp.ge.s32.totalorder %v198, 0
        %vm200 = vcmp.lt.s32.totalorder %v198, 256
        %vm201 = vmand %vm199, %vm200
        %202 = vst.msk [vmem:[%s191] sm:$0x3] %vm201, %v194
        %203 = vst.msk [vmem:[%s191 + $0x2] sm:$0x3] %vm201, %v195
        %204 = vst.msk [vmem:[%s191 + $0x4] sm:$0x3] %vm201, %v196
        %205 = vst.msk [vmem:[%s191 + $0x6] sm:$0x3] %vm201, %v197
        %s206 = sand.u32 %s79, 1
        %s207 = scalar_lea.sflag [#allocation4], %s206
        %s208 = sand.u32 %s79, 1
        %s209 = smul.addr %s208, 8
        %s210 = scalar_lea.vmem [#allocation5], %s209
        // Predicated region
        $region29: #{tpu_custom_call.1} parent=23 // pred_check
          %p211 = pneg %p89
        $region30: #{tpu_custom_call.1} parent=23 // pred_check_branch
          %213 = sbr.rel (%p211) target = $region32
        $region31: #{tpu_custom_call.1} parent=23 // pred_region
          %s214 = smul.u32 2, %s23
          %s216 = ssub.s32 128, 128
          %217 = vsyncadd %s207, %s216
          %s218 = smul.addr %s25, 2
          %s219 = smul.addr %s24, 2
          %s220 = sadd.s32 %s218, %s219
          %s221 = smul.addr %s214, 8
          %s222 = sadd.s32 %s220, %s221
          %s223 = smul.addr %s222, 16
          %s224 = scalar_lea.hbm %s1, %s223
          %s225 = sshll.u32 %s210, 4
          %s226 = int_to_ptr.vmem [resolvable:$true] %s225
          %231 = dma.vmem_to_hbm [thread:$0]  %s226, 128, %s224, %s207, 32, 64, 2
        $region32: #{tpu_custom_call.1} parent=23 // pred_fallthru
          _
      $region24: #{tpu_custom_call.1} parent=5 // pred_fallthru
        _
      %p232 = scmp.le.s32.totalorder 2, %s13
      // Predicated region
      $region33: #{tpu_custom_call.1} parent=5 // pred_check
        %p233 = pneg %p232
      $region34: #{tpu_custom_call.1} parent=5 // pred_check_branch
        %235 = sbr.rel (%p233) target = $region36
      $region35: #{tpu_custom_call.1} parent=5 // pred_region
        %s236 = ssub.s32 %s13, 2
        // Predicated region
        $region37: #{tpu_custom_call.1} parent=35 // pred_check
          %p237 = pneg %p95
        $region38: #{tpu_custom_call.1} parent=35 // pred_check_branch
          %239 = sbr.rel (%p237) target = $region40
        $region39: #{tpu_custom_call.1} parent=35 // pred_region
          %s240 = sand.u32 %s80, 1
          %s241 = scalar_lea.sflag [#allocation4], %s240
          %s242 = sand.u32 %s80, 1
          %s243 = smul.addr %s242, 8
          %s244 = scalar_lea.vmem [#allocation5], %s243
          %245 = dma.done %s241, 128
        $region40: #{tpu_custom_call.1} parent=35 // pred_fallthru
          _
      $region36: #{tpu_custom_call.1} parent=5 // pred_fallthru
        _
    $region6: #{tpu_custom_call.1} parent=1 // loop_footer
      %s17 = sadd.s32 1, %s13
    $region7: #{tpu_custom_call.1} parent=1 // loop_footer_branch
      %12 = sbr.rel target = $region3
    $region8: #{tpu_custom_call.1} parent=1 // loop_exit
      _
    %246 = vsyncpa [#allocation3], 1
    %s247 = scalar_lea.sflag [#allocation3], 1
    %248 = vsyncpa %s247, 1
    %249 = vsyncpa [#allocation4], 1
    %s250 = scalar_lea.sflag [#allocation4], 1
    %251 = vsyncpa %s250, 1

</llo_original>
